<compile_context>
chip_gen: v6e
topology: v6e:2x2x1
jax: 0.10.0
libtpu: 0.0.40
codegen_flags: <defaults>
</compile_context>

<pallas_src>
import numpy as np
import jax
import jax.numpy as jnp
from jax import lax
from jax.experimental import pallas as pl
from jax.experimental.pallas import tpu as pltpu

# --- "hparams" for the synthetic, small-shape test --------------------------
FILTER_LENGTH = 64
HOP_LENGTH = 16
WIN_LENGTH = 64
CUTOFF = FILTER_LENGTH // 2 + 1        # 33
PACK = 2 * FILTER_LENGTH               # 128 lanes: two frames per packed row
TILE_ROWS_MAX = 512                    # packed rows per grid step (sweepable)


def _round_up(x, m):
    return ((x + m - 1) // m) * m


# --- deterministic STFT basis construction (numpy, matches tacotron2 STFT) ---
def _hann_periodic(win_length):
    n = np.arange(win_length, dtype=np.float64)
    return 0.5 - 0.5 * np.cos(2.0 * np.pi * n / win_length)


def _pad_center(x, size):
    out = np.zeros(size, dtype=np.float64)
    start = (size - len(x)) // 2
    out[start:start + len(x)] = x
    return out


def make_stft_bases():
    N, C = FILTER_LENGTH, CUTOFF
    scale = FILTER_LENGTH / HOP_LENGTH
    fourier = np.fft.fft(np.eye(N))
    basis = np.vstack([np.real(fourier[:C, :]), np.imag(fourier[:C, :])])  # (2C, N)
    forward_basis = basis.copy()
    inverse_basis = np.linalg.pinv(scale * basis).T                        # (2C, N)
    window = _hann_periodic(WIN_LENGTH)
    fft_window = _pad_center(window, N)
    forward_basis = forward_basis * fft_window
    inverse_basis = inverse_basis * fft_window
    fwd_re = np.ascontiguousarray(forward_basis[:C].T).astype(np.float32)  # (N, C)
    fwd_im = np.ascontiguousarray(forward_basis[C:].T).astype(np.float32)  # (N, C)
    inv_re = np.ascontiguousarray(inverse_basis[:C]).astype(np.float32)    # (C, N)
    inv_im = np.ascontiguousarray(inverse_basis[C:]).astype(np.float32)    # (C, N)
    return fwd_re, fwd_im, inv_re, inv_im, window


def make_fused_bases(fwd_re, fwd_im, inv_re, inv_im):
    """Fused block-diagonal bf16 bases for two frames packed per 128-lane row.

    Packed-row layout:  lanes [0:64)  = frame A samples, [64:128) = frame B.
    Spectrum layout:    lanes [0:33)  = frame A coeffs,  [64:97)  = frame B,
                        with re in lanes [0:128) and im in lanes [128:256).
    FWD: (128, 256) so one matmul yields [re | im].
    INV: (256, 128) so one matmul recombines re/im back to samples.
    """
    N, C = FILTER_LENGTH, CUTOFF
    fre = np.zeros((PACK, PACK), np.float32)
    fim = np.zeros((PACK, PACK), np.float32)
    ire = np.zeros((PACK, PACK), np.float32)
    iim = np.zeros((PACK, PACK), np.float32)
    fre[0:N, 0:C] = fwd_re
    fre[N:2 * N, N:N + C] = fwd_re
    fim[0:N, 0:C] = fwd_im
    fim[N:2 * N, N:N + C] = fwd_im
    ire[0:C, 0:N] = inv_re
    ire[N:N + C, N:2 * N] = inv_re
    iim[0:C, 0:N] = inv_im
    iim[N:N + C, N:2 * N] = inv_im
    fwd = np.concatenate([fre, fim], axis=1)     # (128, 256)
    inv = np.concatenate([ire, iim], axis=0)     # (256, 128)
    return jnp.asarray(fwd, jnp.bfloat16), jnp.asarray(inv, jnp.bfloat16)


def window_sumsquare(window, n_frames):
    N, hop = FILTER_LENGTH, HOP_LENGTH
    n = N + hop * (n_frames - 1)
    win_sq = _pad_center(window ** 2, N)
    x = np.zeros(n, dtype=np.float64)
    for i in range(n_frames):
        s = i * hop
        x[s:min(n, s + N)] += win_sq[:max(0, min(N, n - s))]
    return x.astype(np.float32)


# --- Pallas kernel: analysis matmul + denoise elementwise + synthesis matmul -
def denoise_kernel(strength_ref, frames_ref, fwd_ref, inv_ref, bias_ref, out_ref):
    x = frames_ref[...]                                                   # (TR,128) bf16
    spec = jnp.dot(x, fwd_ref[...], preferred_element_type=jnp.float32)   # (TR,256) f32
    re = spec[:, :PACK]                                                   # (TR,128)
    im = spec[:, PACK:]                                                   # (TR,128)

    s = re * re + im * im
    nz = s > 0.0
    inv_mag = lax.rsqrt(jnp.where(nz, s, 1.0))        # EUP rsqrt, guarded
    mag = s * inv_mag                                 # == sqrt(s)
    strength = strength_ref[0]
    mag_d = jnp.maximum(mag - bias_ref[...] * strength, 0.0)   # clamp(., 0)
    ratio = mag_d * inv_mag
    # mag_d * cos(atan2(im, re)),  mag_d * sin(atan2(im, re))
    out_re = jnp.where(nz, ratio * re, mag_d).astype(jnp.bfloat16)
    out_im = jnp.where(nz, ratio * im, 0.0).astype(jnp.bfloat16)
    out_spec = jnp.concatenate([out_re, out_im], axis=-1)                 # (TR,256) bf16

    out_ref[...] = jnp.dot(out_spec, inv_ref[...],
                           preferred_element_type=jnp.float32)            # (TR,128) f32


# --- wrapper: framing / pallas_call / overlap-add + window correction --------
def denoiser_forward(audio, strength, bias_spec, fwd_b, inv_b, window):
    B, T = audio.shape
    N, hop, C = FILTER_LENGTH, HOP_LENGTH, CUTOFF
    R = N // hop                                   # frames overlapping each point (4)
    pad = N // 2

    # reflect pad (same as F.pad(..., mode='reflect') in STFT.transform)
    padded = jnp.pad(audio.astype(jnp.float32), ((0, 0), (pad, pad)), mode='reflect')
    L = padded.shape[1]
    assert L % hop == 0, "T must be a multiple of hop_length for structured framing"
    F = (L - N) // hop + 1
    n_seg = L // hop                               # = F + R - 1

    # structured framing (no gather): hop-sized segments, R shifted slices
    segs = padded.reshape(B, n_seg, hop)
    frames = jnp.concatenate([segs[:, k:k + F, :] for k in range(R)], axis=2)  # (B,F,N)

    rows = B * F
    frames_flat = frames.reshape(rows, N)
    if rows % 2:
        frames_flat = jnp.pad(frames_flat, ((0, 1), (0, 0)))
    packed_rows = frames_flat.shape[0] // 2
    frames_packed = frames_flat.reshape(packed_rows, PACK)               # 2 frames / row

    if packed_rows <= TILE_ROWS_MAX:
        tile_rows = _round_up(max(packed_rows, 16), 16)
    else:
        tile_rows = TILE_ROWS_MAX
    rows_pad = _round_up(packed_rows, tile_rows)
    frames_packed = jnp.pad(frames_packed,
                            ((0, rows_pad - packed_rows), (0, 0))).astype(jnp.bfloat16)

    # bias row in packed-spectrum layout (lanes 0:33 frame A, 64:97 frame B)
    bias = bias_spec[0, :, 0].astype(jnp.float32)                        # (C,)
    bias_row = jnp.zeros((1, PACK), jnp.float32)
    bias_row = bias_row.at[0, :C].set(bias).at[0, N:N + C].set(bias)
    strength_arr = jnp.asarray([strength], dtype=jnp.float32)

    out = pl.pallas_call(
        denoise_kernel,
        out_shape=jax.ShapeDtypeStruct((rows_pad, PACK), jnp.float32),
        grid=(rows_pad // tile_rows,),
        in_specs=[
            pl.BlockSpec(memory_space=pltpu.MemorySpace.SMEM),        # strength (1,)
            pl.BlockSpec((tile_rows, PACK), lambda i: (i, 0)),        # packed frames
            pl.BlockSpec((PACK, 2 * PACK), lambda i: (0, 0)),         # fused fwd basis
            pl.BlockSpec((2 * PACK, PACK), lambda i: (0, 0)),         # fused inv basis
            pl.BlockSpec((1, PACK), lambda i: (0, 0)),                # bias row
        ],
        out_specs=pl.BlockSpec((tile_rows, PACK), lambda i: (i, 0)),
        compiler_params=pltpu.CompilerParams(
            dimension_semantics=("parallel",),
            vmem_limit_bytes=32 * 1024 * 1024),
    )(strength_arr, frames_packed, fwd_b, inv_b, bias_row)

    # unpack: (packed_rows, 128) -> (rows, 64)
    out_frames = out[:packed_rows].reshape(2 * packed_rows, N)[:rows].reshape(B, F, N)

    # overlap-add (conv_transpose1d) as R dense shifted adds — no scatter
    chunks = out_frames.reshape(B, F, R, hop)
    ola_seg = sum(jnp.pad(chunks[:, :, k, :], ((0, 0), (k, R - 1 - k), (0, 0)))
                  for k in range(R))                                     # (B, F+R-1, hop)
    n_out = N + hop * (F - 1)                                            # == n_seg*hop
    ola = ola_seg.reshape(B, n_out)

    # window-sumsquare correction (only where > tiny), scale, center crop
    wsum = jnp.asarray(window_sumsquare(window, F))
    tiny = np.finfo(np.float32).tiny
    mask = wsum > tiny
    ola = jnp.where(mask[None, :], ola / jnp.where(mask, wsum, 1.0)[None, :], ola)
    ola = ola * (float(N) / hop)
    ola = ola[:, pad:n_out - pad]
    return ola[:, None, :]                                               # (B, 1, T)


# --- pure-JAX f32 reference (same math, no Pallas) for a sanity check --------
def reference_forward(audio, strength, bias_spec, fwd_re, fwd_im, inv_re, inv_im,
                      window):
    B, T = audio.shape
    N, hop, C = FILTER_LENGTH, HOP_LENGTH, CUTOFF
    pad = N // 2
    padded = jnp.pad(audio.astype(jnp.float32), ((0, 0), (pad, pad)), mode='reflect')
    F = (padded.shape[1] - N) // hop + 1
    frame_idx = np.arange(F)[:, None] * hop + np.arange(N)[None, :]
    frames = padded[:, frame_idx]                                        # (B, F, N)
    re = jnp.einsum('bfn,nc->bfc', frames, fwd_re)
    im = jnp.einsum('bfn,nc->bfc', frames, fwd_im)
    mag = jnp.sqrt(re * re + im * im)
    bias = bias_spec[0, :, 0][None, None, :]
    mag_d = jnp.maximum(mag - bias * strength, 0.0)
    nz = mag > 0.0
    ratio = mag_d / jnp.where(nz, mag, 1.0)
    out_re = jnp.where(nz, ratio * re, mag_d)
    out_im = jnp.where(nz, ratio * im, 0.0)
    out_frames = (jnp.einsum('bfc,cn->bfn', out_re, inv_re)
                  + jnp.einsum('bfc,cn->bfn', out_im, inv_im))
    n_out = N + hop * (F - 1)
    ola = jnp.zeros((B, n_out), jnp.float32).at[:, frame_idx].add(out_frames)
    wsum = jnp.asarray(window_sumsquare(window, F))
    tiny = np.finfo(np.float32).tiny
    mask = wsum > tiny
    ola = jnp.where(mask[None, :], ola / jnp.where(mask, wsum, 1.0)[None, :], ola)
    ola = ola * (float(N) / hop)
    return ola[:, pad:n_out - pad][:, None, :]


if __name__ == "__main__":
    key = jax.random.PRNGKey(0)
    k_audio, k_bias = jax.random.split(key)

    B, T = 2, 256
    audio = jax.random.normal(k_audio, (B, T), dtype=jnp.float32)
    # deterministic, non-negative synthetic bias spectrum (1, cutoff, 1)
    bias_spec = jnp.abs(jax.random.normal(k_bias, (1, CUTOFF, 1), dtype=jnp.float32)) * 0.05
    strength = 0.1

    fwd_re, fwd_im, inv_re, inv_im, window = make_stft_bases()
    fwd_b, inv_b = make_fused_bases(fwd_re, fwd_im, inv_re, inv_im)

    out = denoiser_forward(audio, strength, bias_spec, fwd_b, inv_b, window)
    out = jax.block_until_ready(out)

    ref = jax.block_until_ready(
        reference_forward(audio, strength, bias_spec,
                          jnp.asarray(fwd_re), jnp.asarray(fwd_im),
                          jnp.asarray(inv_re), jnp.asarray(inv_im), window))

    assert out.shape == (B, 1, T), out.shape
    np.testing.assert_allclose(np.asarray(out), np.asarray(ref),
                               rtol=5e-2, atol=5e-2)
    print("KERNEL_OK")
</pallas_src>

<mosaic_0001>
module attributes {stable_mosaic.version = 11 : i64} {
  func.func @denoise_kernel(%arg0: i32, %arg1: memref<1xf32, #tpu.memory_space<smem>>, %arg2: memref<32x128xbf16, #tpu.memory_space<vmem>>, %arg3: memref<128x256xbf16, #tpu.memory_space<vmem>>, %arg4: memref<256x128xbf16, #tpu.memory_space<vmem>>, %arg5: memref<1x128xf32, #tpu.memory_space<vmem>>, %arg6: memref<32x128xf32, #tpu.memory_space<vmem>>) attributes {dimension_semantics = [#tpu.dimension_semantics<parallel>], iteration_bounds = array<i64: 1>, scalar_prefetch = 0 : i64, scratch_operands = 0 : i64, tpu.core_type = #tpu.core_type<tc>, window_params = [{transform_indices = @transform_0, window_bounds = array<i64: 1>}, {transform_indices = @transform_1, window_bounds = array<i64: 32, 128>}, {pipeline_mode = #tpu.pipeline_mode<synchronous>, transform_indices = @transform_2, window_bounds = array<i64: 128, 256>}, {pipeline_mode = #tpu.pipeline_mode<synchronous>, transform_indices = @transform_3, window_bounds = array<i64: 256, 128>}, {pipeline_mode = #tpu.pipeline_mode<synchronous>, transform_indices = @transform_4, window_bounds = array<i64: 1, 128>}, {transform_indices = @transform_5, window_bounds = array<i64: 32, 128>}]} {
    %c0 = arith.constant 0 : index
    %c0_0 = arith.constant 0 : index
    %0 = vector.load %arg2[%c0, %c0_0] : memref<32x128xbf16, #tpu.memory_space<vmem>>, vector<32x128xbf16>
    %c0_1 = arith.constant 0 : index
    %c0_2 = arith.constant 0 : index
    %1 = vector.load %arg3[%c0_1, %c0_2] : memref<128x256xbf16, #tpu.memory_space<vmem>>, vector<128x256xbf16>
    %cst = arith.constant dense<0.000000e+00> : vector<32x256xf32>
    %2 = tpu.matmul %0, %1, %cst {dimension_numbers = #tpu.dot_dimension_numbers<[1], [0], [0], [1], [0, 0, 1, 1], [], []>} : vector<32x128xbf16>, vector<128x256xbf16>, vector<32x256xf32> -> vector<32x256xf32>
    %3 = vector.extract_strided_slice %2 {offsets = [0, 0], sizes = [32, 128], strides = [1, 1]} : vector<32x256xf32> to vector<32x128xf32>
    %4 = vector.extract_strided_slice %2 {offsets = [0, 128], sizes = [32, 128], strides = [1, 1]} : vector<32x256xf32> to vector<32x128xf32>
    %5 = arith.mulf %3, %3 : vector<32x128xf32>
    %6 = arith.mulf %4, %4 : vector<32x128xf32>
    %7 = arith.addf %5, %6 : vector<32x128xf32>
    %cst_3 = arith.constant 0.000000e+00 : f32
    %8 = vector.broadcast %cst_3 : f32 to vector<32x128xf32>
    %9 = arith.cmpf ogt, %7, %8 : vector<32x128xf32>
    %cst_4 = arith.constant 1.000000e+00 : f32
    %10 = vector.broadcast %cst_4 : f32 to vector<32x128xf32>
    %11 = arith.select %9, %7, %10 : vector<32x128xi1>, vector<32x128xf32>
    %12 = math.rsqrt %11 : vector<32x128xf32>
    %13 = arith.mulf %7, %12 : vector<32x128xf32>
    %c0_5 = arith.constant 0 : index
    %14 = memref.load %arg1[%c0_5] : memref<1xf32, #tpu.memory_space<smem>>
    %c0_6 = arith.constant 0 : index
    %c0_7 = arith.constant 0 : index
    %15 = vector.load %arg5[%c0_6, %c0_7] : memref<1x128xf32, #tpu.memory_space<vmem>>, vector<1x128xf32>
    %16 = vector.broadcast %14 : f32 to vector<1x128xf32>
    %17 = arith.mulf %15, %16 : vector<1x128xf32>
    %18 = vector.broadcast %17 : vector<1x128xf32> to vector<32x128xf32>
    %19 = arith.subf %13, %18 : vector<32x128xf32>
    %cst_8 = arith.constant 0.000000e+00 : f32
    %20 = vector.broadcast %cst_8 : f32 to vector<32x128xf32>
    %21 = arith.maximumf %19, %20 : vector<32x128xf32>
    %22 = arith.mulf %21, %12 : vector<32x128xf32>
    %23 = arith.mulf %22, %3 : vector<32x128xf32>
    %24 = arith.select %9, %23, %21 : vector<32x128xi1>, vector<32x128xf32>
    %25 = arith.truncf %24 : vector<32x128xf32> to vector<32x128xbf16>
    %26 = arith.mulf %22, %4 : vector<32x128xf32>
    %cst_9 = arith.constant 0.000000e+00 : f32
    %27 = vector.broadcast %cst_9 : f32 to vector<32x128xf32>
    %28 = arith.select %9, %26, %27 : vector<32x128xi1>, vector<32x128xf32>
    %29 = arith.truncf %28 : vector<32x128xf32> to vector<32x128xbf16>
    %30 = tpu.concatenate %25, %29 in 1 : vector<32x128xbf16>, vector<32x128xbf16> -> vector<32x256xbf16>
    %c0_10 = arith.constant 0 : index
    %c0_11 = arith.constant 0 : index
    %31 = vector.load %arg4[%c0_10, %c0_11] : memref<256x128xbf16, #tpu.memory_space<vmem>>, vector<256x128xbf16>
    %cst_12 = arith.constant dense<0.000000e+00> : vector<32x128xf32>
    %32 = tpu.matmul %30, %31, %cst_12 {dimension_numbers = #tpu.dot_dimension_numbers<[1], [0], [0], [1], [0, 0, 1, 1], [], []>} : vector<32x256xbf16>, vector<256x128xbf16>, vector<32x128xf32> -> vector<32x128xf32>
    %c0_13 = arith.constant 0 : index
    %c0_14 = arith.constant 0 : index
    %33 = vector.load %arg6[%c0_13, %c0_14] : memref<32x128xf32, #tpu.memory_space<vmem>>, vector<32x128xf32>
    tpu.vector_store %arg6[%c0_13, %c0_14], %32 {strides = array<i32>} : memref<32x128xf32, #tpu.memory_space<vmem>>, vector<32x128xf32>,
    return
  }
  func.func @transform_0(%arg0: i32) -> i32 {
    %c0_i32 = arith.constant 0 : i32
    %c0_i32_0 = arith.constant 0 : i32
    return %c0_i32 : i32
  }
  func.func @transform_1(%arg0: i32) -> (i32, i32) {
    %c0_i32 = arith.constant 0 : i32
    %c0_i32_0 = arith.constant 0 : i32
    return %arg0, %c0_i32 : i32, i32
  }
  func.func @transform_2(%arg0: i32) -> (i32, i32) {
    %c0_i32 = arith.constant 0 : i32
    %c0_i32_0 = arith.constant 0 : i32
    %c0_i32_1 = arith.constant 0 : i32
    return %c0_i32, %c0_i32_0 : i32, i32
  }
  func.func @transform_3(%arg0: i32) -> (i32, i32) {
    %c0_i32 = arith.constant 0 : i32
    %c0_i32_0 = arith.constant 0 : i32
    %c0_i32_1 = arith.constant 0 : i32
    return %c0_i32, %c0_i32_0 : i32, i32
  }
  func.func @transform_4(%arg0: i32) -> (i32, i32) {
    %c0_i32 = arith.constant 0 : i32
    %c0_i32_0 = arith.constant 0 : i32
    %c0_i32_1 = arith.constant 0 : i32
    return %c0_i32, %c0_i32_0 : i32, i32
  }
  func.func @transform_5(%arg0: i32) -> (i32, i32) {
    %c0_i32 = arith.constant 0 : i32
    %c0_i32_0 = arith.constant 0 : i32
    return %arg0, %c0_i32 : i32, i32
  }
}

</mosaic_0001>

<llo_original>
// kernel: tpu_custom_call.1
$region0: #{tpu_custom_call.1}
  #allocation0 [shape = 'u32[]', space=smem, size = 0x4, offset = 0x4, fixed_abs, tag = 'smem constant byte address 0x4 - core index']
  #allocation1 [shape = 'u32[144,128]{1,0:T(1,128)}', space=vmem, size = 0x12000, scoped, tag = 'internal scratch']
  #allocation2 [shape = 'f32[1]{0:T(128)S(6)}', space=smem, size = 0x200, scoped, tag = 'scoped memory for tpu_custom_call.1']
  %s0 = inlined_call_operand.<no memory space> [shape: f32[1], index: 0, kind: input, shape index: {}]
  %s1 = inlined_call_operand.hbm [shape: bf16[32,128], index: 1, kind: input, shape index: {}]
  %s2 = inlined_call_operand.hbm [shape: bf16[128,256], index: 2, kind: input, shape index: {}]
  %s3 = inlined_call_operand.hbm [shape: bf16[256,128], index: 3, kind: input, shape index: {}]
  %s4 = inlined_call_operand.vmem [shape: f32[1,128], index: 4, kind: input, shape index: {}]
  %s5 = inlined_call_operand.hbm [shape: f32[32,128], index: 5, kind: output, shape index: {}]
  %s6 = sld [smem:[#allocation0]]
  $region42: #{tpu_custom_call.1} parent=0
    _
  %s8 = ssub.s32 1, %s6
  %s9 = scalar_select 0, %s8, %s6
  %10 = sst [smem:[#allocation2]] %s0
  $region1: #{tpu_custom_call.1} parent=0
    #allocation3 [shape = 'u8[8192]{0}', space=vmem, size = 0x2000, scoped, tag = 'input window, operand 1, single buffered']
    #allocation4 [shape = 's32[1]{0}', space=sflag, size = 0x4, scoped, tag = 'scoped memory for tpu_custom_call.1']
    #allocation5 [shape = 's32[1]{0}', space=sflag, size = 0x4, scoped, tag = 'scoped memory for tpu_custom_call.1']
    #allocation6 [shape = 'u8[65536]{0}', space=vmem, size = 0x10000, scoped, tag = 'input window, operand 2, single buffered']
    #allocation7 [shape = 's32[1]{0}', space=sflag, size = 0x4, scoped, tag = 'scoped memory for tpu_custom_call.1']
    #allocation8 [shape = 'u8[65536]{0}', space=vmem, size = 0x10000, scoped, tag = 'input window, operand 3, single buffered']
    #allocation9 [shape = 'u8[16384]{0}', space=vmem, size = 0x4000, scoped, tag = 'output window, operand 0, single buffered']
    %11 = vsyncpa [#allocation4], 0
    %12 = vsyncpa [#allocation7], 0
    %13 = vsyncpa [#allocation5], 0
    // Predicated region
    $region2: #{tpu_custom_call.1} parent=1 // pred_check
      _
    $region3: #{tpu_custom_call.1} parent=1 // pred_check_branch
      %15 = sbr.rel (0) target = $region5
    $region4: #{tpu_custom_call.1} parent=1 // pred_region
      _
    $region5: #{tpu_custom_call.1} parent=1 // pred_fallthru
      _
    // Predicated region
    $region6: #{tpu_custom_call.1} parent=1 // pred_check
      _
    $region7: #{tpu_custom_call.1} parent=1 // pred_check_branch
      %17 = sbr.rel (0) target = $region9
    $region8: #{tpu_custom_call.1} parent=1 // pred_region
      %s19 = ssub.s32 256, 256
      %20 = vsyncadd [#allocation4], %s19
      %s21 = sshll.u32 [#allocation3], 4
      %s22 = int_to_ptr.vmem [resolvable:$true] %s21
      %27 = dma.hbm_to_vmem [thread:$0]  %s1, 256, %s22, [#allocation4], 64, 64, 4
    $region9: #{tpu_custom_call.1} parent=1 // pred_fallthru
      _
    // Predicated region
    $region10: #{tpu_custom_call.1} parent=1 // pred_check
      _
    $region11: #{tpu_custom_call.1} parent=1 // pred_check_branch
      %29 = sbr.rel (0) target = $region13
    $region12: #{tpu_custom_call.1} parent=1 // pred_region
      %s31 = ssub.s32 2048, 2048
      %32 = vsyncadd [#allocation7], %s31
      %s33 = sshll.u32 [#allocation6], 4
      %s34 = int_to_ptr.vmem [resolvable:$true] %s33
      %39 = dma.hbm_to_vmem [thread:$0]  %s2, 2048, %s34, [#allocation7], 128, 128, 8
    $region13: #{tpu_custom_call.1} parent=1 // pred_fallthru
      _
    // Predicated region
    $region14: #{tpu_custom_call.1} parent=1 // pred_check
      _
    $region15: #{tpu_custom_call.1} parent=1 // pred_check_branch
      %41 = sbr.rel (0) target = $region17
    $region16: #{tpu_custom_call.1} parent=1 // pred_region
      %s43 = ssub.s32 2048, 2048
      %44 = vsyncadd [#allocation7], %s43
      %s45 = sshll.u32 [#allocation8], 4
      %s46 = int_to_ptr.vmem [resolvable:$true] %s45
      %51 = dma.hbm_to_vmem [thread:$0]  %s3, 2048, %s46, [#allocation7], 64, 64, 4
    $region17: #{tpu_custom_call.1} parent=1 // pred_fallthru
      _
    // Predicated region
    $region18: #{tpu_custom_call.1} parent=1 // pred_check
      _
    $region19: #{tpu_custom_call.1} parent=1 // pred_check_branch
      %53 = sbr.rel (0) target = $region21
    $region20: #{tpu_custom_call.1} parent=1 // pred_region
      _
    $region21: #{tpu_custom_call.1} parent=1 // pred_fallthru
      _
    // Predicated region
    $region22: #{tpu_custom_call.1} parent=1 // pred_check
      _
    $region23: #{tpu_custom_call.1} parent=1 // pred_check_branch
      %55 = sbr.rel (0) target = $region25
    $region24: #{tpu_custom_call.1} parent=1 // pred_region
      %56 = dma.done [#allocation4], 256
    $region25: #{tpu_custom_call.1} parent=1 // pred_fallthru
      _
    // Predicated region
    $region26: #{tpu_custom_call.1} parent=1 // pred_check
      _
    $region27: #{tpu_custom_call.1} parent=1 // pred_check_branch
      %58 = sbr.rel (0) target = $region29
    $region28: #{tpu_custom_call.1} parent=1 // pred_region
      %59 = dma.done [#allocation7], 2048
    $region29: #{tpu_custom_call.1} parent=1 // pred_fallthru
      _
    // Predicated region
    $region30: #{tpu_custom_call.1} parent=1 // pred_check
      _
    $region31: #{tpu_custom_call.1} parent=1 // pred_check_branch
      %61 = sbr.rel (0) target = $region33
    $region32: #{tpu_custom_call.1} parent=1 // pred_region
      %62 = dma.done [#allocation7], 2048
    $region33: #{tpu_custom_call.1} parent=1 // pred_fallthru
      _
    %v64 = vld [vmem:[#allocation3] sm:$0xf]
    %v65 = vld [vmem:[#allocation3 + $0x4] sm:$0xf]
    %v66 = vld [vmem:[#allocation3 + $0x8] sm:$0xf]
    %v67 = vld [vmem:[#allocation3 + $0xc] sm:$0xf]
    %v68 = vld [vmem:[#allocation6] sm:$0xff]
    %v69 = vld [vmem:[#allocation6 + $0x8] sm:$0xff]
    %v70 = vld [vmem:[#allocation6 + $0x10] sm:$0xff]
    %v71 = vld [vmem:[#allocation6 + $0x18] sm:$0xff]
    %v72 = vld [vmem:[#allocation6 + $0x20] sm:$0xff]
    %v73 = vld [vmem:[#allocation6 + $0x28] sm:$0xff]
    %v74 = vld [vmem:[#allocation6 + $0x30] sm:$0xff]
    %v75 = vld [vmem:[#allocation6 + $0x38] sm:$0xff]
    %v76 = vld [vmem:[#allocation6 + $0x40] sm:$0xff]
    %v77 = vld [vmem:[#allocation6 + $0x48] sm:$0xff]
    %v78 = vld [vmem:[#allocation6 + $0x50] sm:$0xff]
    %v79 = vld [vmem:[#allocation6 + $0x58] sm:$0xff]
    %v80 = vld [vmem:[#allocation6 + $0x60] sm:$0xff]
    %v81 = vld [vmem:[#allocation6 + $0x68] sm:$0xff]
    %v82 = vld [vmem:[#allocation6 + $0x70] sm:$0xff]
    %v83 = vld [vmem:[#allocation6 + $0x78] sm:$0xff]
    %v88 = vunpack.c.l.b16 %v64
    %v89 = vunpack.c.l.b16 %v65
    %v90 = vunpack.c.l.b16 %v66
    %v91 = vunpack.c.l.b16 %v67
    %v92 = vpack.c.b16 %v89, %v88
    %v93 = vpack.c.b16 %v91, %v90
    %v112 = vunpack.c.l.b16 %v68
    %v113 = vunpack.c.h.b16 %v68
    %v114 = vunpack.c.l.b16 %v69
    %v115 = vunpack.c.h.b16 %v69
    %v116 = vunpack.c.l.b16 %v70
    %v117 = vunpack.c.h.b16 %v70
    %v118 = vunpack.c.l.b16 %v71
    %v119 = vunpack.c.h.b16 %v71
    %v120 = vunpack.c.l.b16 %v72
    %v121 = vunpack.c.h.b16 %v72
    %v122 = vunpack.c.l.b16 %v73
    %v123 = vunpack.c.h.b16 %v73
    %v124 = vunpack.c.l.b16 %v74
    %v125 = vunpack.c.h.b16 %v74
    %v126 = vunpack.c.l.b16 %v75
    %v127 = vunpack.c.h.b16 %v75
    %v128 = vunpack.c.l.b16 %v76
    %v129 = vunpack.c.h.b16 %v76
    %v130 = vunpack.c.l.b16 %v77
    %v131 = vunpack.c.h.b16 %v77
    %v132 = vunpack.c.l.b16 %v78
    %v133 = vunpack.c.h.b16 %v78
    %v134 = vunpack.c.l.b16 %v79
    %v135 = vunpack.c.h.b16 %v79
    %v136 = vunpack.c.l.b16 %v80
    %v137 = vunpack.c.h.b16 %v80
    %v138 = vunpack.c.l.b16 %v81
    %v139 = vunpack.c.h.b16 %v81
    %v140 = vunpack.c.l.b16 %v82
    %v141 = vunpack.c.h.b16 %v82
    %v142 = vunpack.c.l.b16 %v83
    %v143 = vunpack.c.h.b16 %v83
    %v144 = vpack.c.b16 %v114, %v112
    %v145 = vpack.c.b16 %v115, %v113
    %v146 = vpack.c.b16 %v118, %v116
    %v147 = vpack.c.b16 %v119, %v117
    %v148 = vpack.c.b16 %v122, %v120
    %v149 = vpack.c.b16 %v123, %v121
    %v150 = vpack.c.b16 %v126, %v124
    %v151 = vpack.c.b16 %v127, %v125
    %v152 = vpack.c.b16 %v130, %v128
    %v153 = vpack.c.b16 %v131, %v129
    %v154 = vpack.c.b16 %v134, %v132
    %v155 = vpack.c.b16 %v135, %v133
    %v156 = vpack.c.b16 %v138, %v136
    %v157 = vpack.c.b16 %v139, %v137
    %v158 = vpack.c.b16 %v142, %v140
    %v159 = vpack.c.b16 %v143, %v141
    %176 = vmatprep.subr.bf16.mxu0 %v159
    %177 = vmatpush1.bf16.msra.mxu0 %v158
    %178 = vmatprep.subr.bf16.mxu0 %v157
    %179 = vmatpush1.bf16.msra.mxu0 %v156
    %180 = vmatprep.subr.bf16.mxu0 %v155
    %181 = vmatpush1.bf16.msra.mxu0 %v154
    %182 = vmatprep.subr.bf16.mxu0 %v153
    %183 = vmatpush1.bf16.msra.mxu0 %v152
    %184 = vmatprep.subr.bf16.mxu0 %v151
    %185 = vmatpush1.bf16.msra.mxu0 %v150
    %186 = vmatprep.subr.bf16.mxu0 %v149
    %187 = vmatpush1.bf16.msra.mxu0 %v148
    %188 = vmatprep.subr.bf16.mxu0 %v147
    %189 = vmatpush1.bf16.msra.mxu0 %v146
    %190 = vmatprep.subr.bf16.mxu0 %v145
    %191 = vmatpush1.bf16.msra.mxu0 %v144
    %192 = vmatprep.subr.bf16.mxu0 0
    %193 = vmatpush2.bf16.msra.mxu0 0
    %194 = vmatprep.subr.bf16.mxu0 0
    %195 = vmatpush2.bf16.msra.mxu0 0
    %196 = vmatprep.subr.bf16.mxu0 0
    %197 = vmatpush2.bf16.msra.mxu0 0
    %198 = vmatprep.subr.bf16.mxu0 0
    %199 = vmatpush2.bf16.msra.mxu0 0
    %200 = vmatprep.subr.bf16.mxu0 0
    %201 = vmatpush2.bf16.msra.mxu0 0
    %202 = vmatprep.subr.bf16.mxu0 0
    %203 = vmatpush2.bf16.msra.mxu0 0
    %204 = vmatprep.subr.bf16.mxu0 0
    %205 = vmatpush2.bf16.msra.mxu0 0
    %206 = vmatprep.subr.bf16.mxu0 0
    %207 = vmatpush2.bf16.msra.mxu0 0
    %208 = vmatprep.mubr.bf16.mxu0 0
    %209 = vmatmul.mubr.bf16.gmra.mxu0 %v92
    %v210 = vpop.f32.mrf.mxu0
    %v211 = vadd.f32 0.0, %v210
    %v212 = vpop.f32.mrf.mxu0
    %v213 = vadd.f32 0.0, %v212
    %v214 = vpop.f32.mrf.mxu0
    %v215 = vadd.f32 0.0, %v214
    %v216 = vpop.f32.mrf.mxu0
    %v217 = vadd.f32 0.0, %v216
    %218 = vmatprep.mubr.bf16.mxu0 0
    %219 = vmatmul.mubr.bf16.gmra.mxu0 %v93
    %v220 = vpop.f32.mrf.mxu0
    %v221 = vadd.f32 0.0, %v220
    %v222 = vpop.f32.mrf.mxu0
    %v223 = vadd.f32 0.0, %v222
    %v224 = vpop.f32.mrf.mxu0
    %v225 = vadd.f32 0.0, %v224
    %v226 = vpop.f32.mrf.mxu0
    %v227 = vadd.f32 0.0, %v226
    %228 = vdwg.mxu0
    %v229 = vmul.f32 %v211, %v211
    %v230 = vmul.f32 %v215, %v215
    %v231 = vmul.f32 %v221, %v221
    %v232 = vmul.f32 %v225, %v225
    %v233 = vmul.f32 %v213, %v213
    %v234 = vmul.f32 %v217, %v217
    %v235 = vmul.f32 %v223, %v223
    %v236 = vmul.f32 %v227, %v227
    %v237 = vadd.f32 %v229, %v233
    %v238 = vadd.f32 %v230, %v234
    %v239 = vadd.f32 %v231, %v235
    %v240 = vadd.f32 %v232, %v236
    %vm241 = vcmp.gt.f32.partialorder %v237, 0.0
    %vm242 = vcmp.gt.f32.partialorder %v238, 0.0
    %vm243 = vcmp.gt.f32.partialorder %v239, 0.0
    %vm244 = vcmp.gt.f32.partialorder %v240, 0.0
    %v245 = vsel %vm241, %v237, 1.0
    %v246 = vsel %vm242, %v238, 1.0
    %v247 = vsel %vm243, %v239, 1.0
    %v248 = vsel %vm244, %v240, 1.0
    %v249 = vrsqrt.pop %v245
    %v250 = vrsqrt.pop %v246
    %v251 = vrsqrt.pop %v247
    %v252 = vrsqrt.pop %v248
    %v253 = vmul.f32 %v237, %v249
    %v254 = vmul.f32 %v238, %v250
    %v255 = vmul.f32 %v239, %v251
    %v256 = vmul.f32 %v240, %v252
    %s257 = sld [smem:[#allocation2]]
    %v258 = vld [vmem:[%s4] sm:$0x1]
    %v259 = vstv %s257
    %v260 = vmul.f32 %v258, %v259
    %v262 = vlaneseq
    %v263 = vshrl.u32 %v262, 7
    %v264 = vsub.s32 0, %v263
    %v265 = vrot.slane %v260, %v264
    %v267 = vsub.f32 %v253, %v265
    %v268 = vsub.f32 %v254, %v265
    %v269 = vsub.f32 %v255, %v265
    %v270 = vsub.f32 %v256, %v265
    %v271 = vmax.f32 %v267, 0.0
    %v272 = vmax.f32 %v268, 0.0
    %v273 = vmax.f32 %v269, 0.0
    %v274 = vmax.f32 %v270, 0.0
    %v275 = vmul.f32 %v271, %v249
    %v276 = vmul.f32 %v272, %v250
    %v277 = vmul.f32 %v273, %v251
    %v278 = vmul.f32 %v274, %v252
    %v279 = vmul.f32 %v275, %v211
    %v280 = vmul.f32 %v276, %v215
    %v281 = vmul.f32 %v277, %v221
    %v282 = vmul.f32 %v278, %v225
    %v283 = vsel %vm241, %v279, %v271
    %v284 = vsel %vm242, %v280, %v272
    %v285 = vsel %vm243, %v281, %v273
    %v286 = vsel %vm244, %v282, %v274
    %v287 = vpack.c.bf16 %v284, %v283
    %v288 = vpack.c.bf16 %v286, %v285
    %v289 = vmul.f32 %v275, %v213
    %v290 = vmul.f32 %v276, %v217
    %v291 = vmul.f32 %v277, %v223
    %v292 = vmul.f32 %v278, %v227
    %v293 = vsel %vm241, %v289, 0.0
    %v294 = vsel %vm242, %v290, 0.0
    %v295 = vsel %vm243, %v291, 0.0
    %v296 = vsel %vm244, %v292, 0.0
    %v297 = vpack.c.bf16 %v294, %v293
    %v298 = vpack.c.bf16 %v296, %v295
    %v299 = vld [vmem:[#allocation8] sm:$0xf]
    %v300 = vld [vmem:[#allocation8 + $0x4] sm:$0xf]
    %v301 = vld [vmem:[#allocation8 + $0x8] sm:$0xf]
    %v302 = vld [vmem:[#allocation8 + $0xc] sm:$0xf]
    %v303 = vld [vmem:[#allocation8 + $0x10] sm:$0xf]
    %v304 = vld [vmem:[#allocation8 + $0x14] sm:$0xf]
    %v305 = vld [vmem:[#allocation8 + $0x18] sm:$0xf]
    %v306 = vld [vmem:[#allocation8 + $0x1c] sm:$0xf]
    %v307 = vld [vmem:[#allocation8 + $0x20] sm:$0xf]
    %v308 = vld [vmem:[#allocation8 + $0x24] sm:$0xf]
    %v309 = vld [vmem:[#allocation8 + $0x28] sm:$0xf]
    %v310 = vld [vmem:[#allocation8 + $0x2c] sm:$0xf]
    %v311 = vld [vmem:[#allocation8 + $0x30] sm:$0xf]
    %v312 = vld [vmem:[#allocation8 + $0x34] sm:$0xf]
    %v313 = vld [vmem:[#allocation8 + $0x38] sm:$0xf]
    %v314 = vld [vmem:[#allocation8 + $0x3c] sm:$0xf]
    %v315 = vld [vmem:[#allocation8 + $0x40] sm:$0xf]
    %v316 = vld [vmem:[#allocation8 + $0x44] sm:$0xf]
    %v317 = vld [vmem:[#allocation8 + $0x48] sm:$0xf]
    %v318 = vld [vmem:[#allocation8 + $0x4c] sm:$0xf]
    %v319 = vld [vmem:[#allocation8 + $0x50] sm:$0xf]
    %v320 = vld [vmem:[#allocation8 + $0x54] sm:$0xf]
    %v321 = vld [vmem:[#allocation8 + $0x58] sm:$0xf]
    %v322 = vld [vmem:[#allocation8 + $0x5c] sm:$0xf]
    %v323 = vld [vmem:[#allocation8 + $0x60] sm:$0xf]
    %v324 = vld [vmem:[#allocation8 + $0x64] sm:$0xf]
    %v325 = vld [vmem:[#allocation8 + $0x68] sm:$0xf]
    %v326 = vld [vmem:[#allocation8 + $0x6c] sm:$0xf]
    %v327 = vld [vmem:[#allocation8 + $0x70] sm:$0xf]
    %v328 = vld [vmem:[#allocation8 + $0x74] sm:$0xf]
    %v329 = vld [vmem:[#allocation8 + $0x78] sm:$0xf]
    %v330 = vld [vmem:[#allocation8 + $0x7c] sm:$0xf]
    %v363 = vunpack.c.l.b16 %v299
    %v364 = vunpack.c.l.b16 %v300
    %v365 = vunpack.c.l.b16 %v301
    %v366 = vunpack.c.l.b16 %v302
    %v367 = vunpack.c.l.b16 %v303
    %v368 = vunpack.c.l.b16 %v304
    %v369 = vunpack.c.l.b16 %v305
    %v370 = vunpack.c.l.b16 %v306
    %v371 = vunpack.c.l.b16 %v307
    %v372 = vunpack.c.l.b16 %v308
    %v373 = vunpack.c.l.b16 %v309
    %v374 = vunpack.c.l.b16 %v310
    %v375 = vunpack.c.l.b16 %v311
    %v376 = vunpack.c.l.b16 %v312
    %v377 = vunpack.c.l.b16 %v313
    %v378 = vunpack.c.l.b16 %v314
    %v379 = vunpack.c.l.b16 %v315
    %v380 = vunpack.c.l.b16 %v316
    %v381 = vunpack.c.l.b16 %v317
    %v382 = vunpack.c.l.b16 %v318
    %v383 = vunpack.c.l.b16 %v319
    %v384 = vunpack.c.l.b16 %v320
    %v385 = vunpack.c.l.b16 %v321
    %v386 = vunpack.c.l.b16 %v322
    %v387 = vunpack.c.l.b16 %v323
    %v388 = vunpack.c.l.b16 %v324
    %v389 = vunpack.c.l.b16 %v325
    %v390 = vunpack.c.l.b16 %v326
    %v391 = vunpack.c.l.b16 %v327
    %v392 = vunpack.c.l.b16 %v328
    %v393 = vunpack.c.l.b16 %v329
    %v394 = vunpack.c.l.b16 %v330
    %v395 = vpack.c.b16 %v364, %v363
    %v396 = vpack.c.b16 %v366, %v365
    %v397 = vpack.c.b16 %v368, %v367
    %v398 = vpack.c.b16 %v370, %v369
    %v399 = vpack.c.b16 %v372, %v371
    %v400 = vpack.c.b16 %v374, %v373
    %v401 = vpack.c.b16 %v376, %v375
    %v402 = vpack.c.b16 %v378, %v377
    %v403 = vpack.c.b16 %v380, %v379
    %v404 = vpack.c.b16 %v382, %v381
    %v405 = vpack.c.b16 %v384, %v383
    %v406 = vpack.c.b16 %v386, %v385
    %v407 = vpack.c.b16 %v388, %v387
    %v408 = vpack.c.b16 %v390, %v389
    %v409 = vpack.c.b16 %v392, %v391
    %v410 = vpack.c.b16 %v394, %v393
    %427 = vmatprep.subr.bf16.mxu0 0
    %428 = vmatpush1.bf16.msra.mxu0 %v402
    %429 = vmatprep.subr.bf16.mxu0 0
    %430 = vmatpush1.bf16.msra.mxu0 %v401
    %431 = vmatprep.subr.bf16.mxu0 0
    %432 = vmatpush1.bf16.msra.mxu0 %v400
    %433 = vmatprep.subr.bf16.mxu0 0
    %434 = vmatpush1.bf16.msra.mxu0 %v399
    %435 = vmatprep.subr.bf16.mxu0 0
    %436 = vmatpush1.bf16.msra.mxu0 %v398
    %437 = vmatprep.subr.bf16.mxu0 0
    %438 = vmatpush1.bf16.msra.mxu0 %v397
    %439 = vmatprep.subr.bf16.mxu0 0
    %440 = vmatpush1.bf16.msra.mxu0 %v396
    %441 = vmatprep.subr.bf16.mxu0 0
    %442 = vmatpush1.bf16.msra.mxu0 %v395
    %443 = vmatprep.subr.bf16.mxu0 0
    %444 = vmatpush2.bf16.msra.mxu0 %v410
    %445 = vmatprep.subr.bf16.mxu0 0
    %446 = vmatpush2.bf16.msra.mxu0 %v409
    %447 = vmatprep.subr.bf16.mxu0 0
    %448 = vmatpush2.bf16.msra.mxu0 %v408
    %449 = vmatprep.subr.bf16.mxu0 0
    %450 = vmatpush2.bf16.msra.mxu0 %v407
    %451 = vmatprep.subr.bf16.mxu0 0
    %452 = vmatpush2.bf16.msra.mxu0 %v406
    %453 = vmatprep.subr.bf16.mxu0 0
    %454 = vmatpush2.bf16.msra.mxu0 %v405
    %455 = vmatprep.subr.bf16.mxu0 0
    %456 = vmatpush2.bf16.msra.mxu0 %v404
    %457 = vmatprep.subr.bf16.mxu0 0
    %458 = vmatpush2.bf16.msra.mxu0 %v403
    %459 = vmatprep.mubr.bf16.mxu0 %v297
    %460 = vmatmul.mubr.bf16.gmra.mxu0 %v287
    %v461 = vpop.f32.mrf.mxu0
    %v462 = vadd.f32 0.0, %v461
    %v463 = vpop.f32.mrf.mxu0
    %v464 = vpop.f32.mrf.mxu0
    %v465 = vadd.f32 0.0, %v464
    %v466 = vpop.f32.mrf.mxu0
    %467 = vmatprep.mubr.bf16.mxu0 %v298
    %468 = vmatmul.mubr.bf16.gmra.mxu0 %v288
    %v469 = vpop.f32.mrf.mxu0
    %v470 = vadd.f32 0.0, %v469
    %v471 = vpop.f32.mrf.mxu0
    %v472 = vpop.f32.mrf.mxu0
    %v473 = vadd.f32 0.0, %v472
    %v474 = vpop.f32.mrf.mxu0
    %475 = vdwg.mxu0
    %476 = vst [vmem:[#allocation9] sm:$0xff] %v462
    %477 = vst [vmem:[#allocation9 + $0x8] sm:$0xff] %v465
    %478 = vst [vmem:[#allocation9 + $0x10] sm:$0xff] %v470
    %479 = vst [vmem:[#allocation9 + $0x18] sm:$0xff] %v473
    // Predicated region
    $region34: #{tpu_custom_call.1} parent=1 // pred_check
      _
    $region35: #{tpu_custom_call.1} parent=1 // pred_check_branch
      %481 = sbr.rel (0) target = $region37
    $region36: #{tpu_custom_call.1} parent=1 // pred_region
      %s483 = ssub.s32 512, 512
      %484 = vsyncadd [#allocation5], %s483
      %s485 = sshll.u32 [#allocation9], 4
      %s486 = int_to_ptr.vmem [resolvable:$true] %s485
      %491 = dma.vmem_to_hbm [thread:$0]  %s486, 512, %s5, [#allocation5], 128, 128, 8
    $region37: #{tpu_custom_call.1} parent=1 // pred_fallthru
      _
    // Predicated region
    $region38: #{tpu_custom_call.1} parent=1 // pred_check
      _
    $region39: #{tpu_custom_call.1} parent=1 // pred_check_branch
      %493 = sbr.rel (0) target = $region41
    $region40: #{tpu_custom_call.1} parent=1 // pred_region
      %494 = dma.done [#allocation5], 512
    $region41: #{tpu_custom_call.1} parent=1 // pred_fallthru
      _
    %495 = vsyncpa [#allocation4], 1
    %496 = vsyncpa [#allocation7], 1
    %497 = vsyncpa [#allocation5], 1

</llo_original>
